<compile_context>
chip_gen: v5e
topology: v5e:2x2
jax: 0.10.0
libtpu: 0.0.40
codegen_flags: <defaults>
</compile_context>

<pallas_src>
import functools

import jax
import jax.numpy as jnp
from jax import lax
from jax.experimental import pallas as pl
from jax.experimental.pallas import tpu as pltpu

_MB = 1024 * 1024


# ------------------------------ tiling helpers ------------------------------

def _pick_tile(dim, pref, align):
    """Largest tile <= pref that divides dim and is a multiple of align; else full dim.

    The token dimension is padded to a multiple of 128 by the caller, so the
    full-dim fallback only triggers for static model-config dims (which are
    multiples of 128 for real SantaCoder configs)."""
    if dim <= pref:
        return dim
    t = (pref // align) * align
    while t >= align:
        if dim % t == 0:
            return t
        t -= align
    return dim


def _vmem_limit(bytes_needed):
    # Explicit scoped-VMEM limit (defaults: 16 MiB v5e / 32 MiB v6e+).  Capped
    # at 64 MiB so the same tiling also fits v7x physical VMEM.
    return int(max(32 * _MB, min(int(bytes_needed * 1.5) + 2 * _MB, 64 * _MB)))


def _pad_tokens(h, mult=128):
    """Pad the token (row) dim up to a multiple of `mult`. Returns (padded, T_real)."""
    T = h.shape[0]
    pad = (-T) % mult
    if pad:
        h = jnp.pad(h, ((0, pad), (0, 0)))
    return h, T


# ------------------------------ tiled linear ------------------------------

def _linear_kernel(*refs, activation, has_bias):
    if has_bias:
        x_ref, w_ref, b_ref, o_ref, acc_ref = refs
    else:
        x_ref, w_ref, o_ref, acc_ref = refs
        b_ref = None
    k = pl.program_id(2)

    @pl.when(k == 0)
    def _():
        acc_ref[...] = jnp.zeros_like(acc_ref)

    acc_ref[...] += jnp.dot(x_ref[...], w_ref[...],
                            preferred_element_type=jnp.float32)

    @pl.when(k == pl.num_programs(2) - 1)
    def _():
        y = acc_ref[...]
        if b_ref is not None:
            y = y + b_ref[...].astype(jnp.float32)
        if activation == "gelu_tanh":
            y = jax.nn.gelu(y, approximate=True)
        o_ref[...] = y.astype(o_ref.dtype)


def linear(x, w, b=None, activation=None, out_dtype=None,
           tile_m=512, tile_n=512, tile_k=512):
    """y = act(x @ w + b). x: (T, K), w: (K, N), b: (N,) or None."""
    T, K = x.shape
    N = w.shape[1]
    out_dtype = x.dtype if out_dtype is None else out_dtype
    tm = _pick_tile(T, tile_m, 16)
    tn = _pick_tile(N, tile_n, 128)
    tk = _pick_tile(K, tile_k, 128)
    grid = (T // tm, N // tn, K // tk)

    in_specs = [
        pl.BlockSpec((tm, tk), lambda i, j, k: (i, k)),
        pl.BlockSpec((tk, tn), lambda i, j, k: (k, j)),
    ]
    args = [x, w]
    if b is not None:
        in_specs.append(pl.BlockSpec((1, tn), lambda i, j, k: (0, j)))
        args.append(b.reshape(1, N))

    obytes = jnp.dtype(out_dtype).itemsize
    blocks = (tm * tk * x.dtype.itemsize + tk * tn * w.dtype.itemsize
              + (tn * 2 if b is not None else 0) + tm * tn * obytes)
    vmem = _vmem_limit(2 * blocks + tm * tn * 4)

    return pl.pallas_call(
        functools.partial(_linear_kernel, activation=activation,
                          has_bias=b is not None),
        out_shape=jax.ShapeDtypeStruct((T, N), out_dtype),
        grid_spec=pltpu.PrefetchScalarGridSpec(
            num_scalar_prefetch=0,
            grid=grid,
            in_specs=in_specs,
            out_specs=pl.BlockSpec((tm, tn), lambda i, j, k: (i, j)),
            scratch_shapes=[pltpu.VMEM((tm, tn), jnp.float32)],
        ),
        compiler_params=pltpu.CompilerParams(
            dimension_semantics=("parallel", "parallel", "arbitrary"),
            vmem_limit_bytes=vmem),
    )(*args)


# ------------------------------ layer norm ------------------------------

def _layernorm_res_kernel(x_ref, res_ref, g_ref, b_ref, y_ref, newres_ref, *, eps):
    # FastLayerNorm: residual = x + residual; y = LN(residual)
    x = x_ref[...].astype(jnp.float32) + res_ref[...].astype(jnp.float32)
    newres_ref[...] = x.astype(newres_ref.dtype)
    mean = jnp.mean(x, axis=-1, keepdims=True)
    xc = x - mean
    var = jnp.mean(xc * xc, axis=-1, keepdims=True)
    y = xc * lax.rsqrt(var + eps)
    y = y * g_ref[...].astype(jnp.float32) + b_ref[...].astype(jnp.float32)
    y_ref[...] = y.astype(y_ref.dtype)


def _layernorm_nores_kernel(x_ref, g_ref, b_ref, y_ref, *, eps):
    x = x_ref[...].astype(jnp.float32)
    mean = jnp.mean(x, axis=-1, keepdims=True)
    xc = x - mean
    var = jnp.mean(xc * xc, axis=-1, keepdims=True)
    y = xc * lax.rsqrt(var + eps)
    y = y * g_ref[...].astype(jnp.float32) + b_ref[...].astype(jnp.float32)
    y_ref[...] = y.astype(y_ref.dtype)


def layer_norm(x, gamma, beta, eps, residual=None):
    """Returns (LN output, new residual). residual=None -> new residual is x."""
    T, H = x.shape
    tm = _pick_tile(T, 256, 16)
    grid = (T // tm,)
    g = gamma.reshape(1, H)
    b = beta.reshape(1, H)
    vmem = _vmem_limit(2 * (4 * tm * H * x.dtype.itemsize + 2 * H * 2))
    cp = pltpu.CompilerParams(dimension_semantics=("parallel",),
                              vmem_limit_bytes=vmem)

    if residual is None:
        y = pl.pallas_call(
            functools.partial(_layernorm_nores_kernel, eps=eps),
            out_shape=jax.ShapeDtypeStruct((T, H), x.dtype),
            grid_spec=pltpu.PrefetchScalarGridSpec(
                num_scalar_prefetch=0, grid=grid,
                in_specs=[pl.BlockSpec((tm, H), lambda i: (i, 0)),
                          pl.BlockSpec((1, H), lambda i: (0, 0)),
                          pl.BlockSpec((1, H), lambda i: (0, 0))],
                out_specs=pl.BlockSpec((tm, H), lambda i: (i, 0)),
            ),
            compiler_params=cp,
        )(x, g, b)
        return y, x

    y, new_res = pl.pallas_call(
        functools.partial(_layernorm_res_kernel, eps=eps),
        out_shape=(jax.ShapeDtypeStruct((T, H), x.dtype),
                   jax.ShapeDtypeStruct((T, H), x.dtype)),
        grid_spec=pltpu.PrefetchScalarGridSpec(
            num_scalar_prefetch=0, grid=grid,
            in_specs=[pl.BlockSpec((tm, H), lambda i: (i, 0)),
                      pl.BlockSpec((tm, H), lambda i: (i, 0)),
                      pl.BlockSpec((1, H), lambda i: (0, 0)),
                      pl.BlockSpec((1, H), lambda i: (0, 0))],
            out_specs=(pl.BlockSpec((tm, H), lambda i: (i, 0)),
                       pl.BlockSpec((tm, H), lambda i: (i, 0))),
        ),
        compiler_params=cp,
    )(x, residual, g, b)
    return y, new_res


# ------------------------------ flash MQA attention (head-batched) -----------

def _mqa_flash_kernel(q_ref, k_ref, v_ref, o_ref, q2_sc, m_sc, l_sc, acc_sc,
                      *, num_heads, head_size, tq, tk):
    qi = pl.program_id(0)
    ki = pl.program_id(1)
    D = head_size

    @pl.when(ki == 0)
    def _():
        # Relayout Q (tq, H*D) -> head-major rows (H*tq, D) once per qi row.
        # Lane-aligned 128-wide slices + sublane concat (cheap, always lowers).
        q = q_ref[...]
        q2_sc[...] = jnp.concatenate(
            [q[:, h * D:(h + 1) * D] for h in range(num_heads)], axis=0)
        m_sc[...] = jnp.full_like(m_sc, -jnp.inf)
        l_sc[...] = jnp.zeros_like(l_sc)
        acc_sc[...] = jnp.zeros_like(acc_sc)

    def process(masked):
        # NOTE: softmax scale is already folded into the Q projection weights.
        q2 = q2_sc[...]                                  # (H*tq, D) bf16
        k = k_ref[...]                                   # (tk, D) bf16 (shared)
        v = v_ref[...]                                   # (tk, D) bf16 (shared)
        s = lax.dot_general(q2, k, (((1,), (1,)), ((), ())),
                            preferred_element_type=jnp.float32)   # (H*tq, tk)
        if masked:
            # Only the diagonal block (ki == qi, tq == tk) needs masking; the
            # block offsets cancel so the mask is purely intra-block.
            row = lax.broadcasted_iota(jnp.int32, (tq, tk), 0)
            col = lax.broadcasted_iota(jnp.int32, (tq, tk), 1)
            neg = jnp.where(col <= row, 0.0, -1e30).astype(jnp.float32)
            if num_heads > 1:
                neg = jnp.concatenate([neg] * num_heads, axis=0)
            s = s + neg
        m_prev = m_sc[...]
        m_new = jnp.maximum(m_prev, s.max(axis=-1, keepdims=True))
        alpha = jnp.exp(m_prev - m_new)
        p = jnp.exp(s - m_new)
        l_sc[...] = alpha * l_sc[...] + p.sum(axis=-1, keepdims=True)
        acc_sc[...] = alpha * acc_sc[...] + jnp.dot(
            p.astype(v.dtype), v, preferred_element_type=jnp.float32)
        m_sc[...] = m_new

    # Interior (fully-unmasked) blocks skip all mask math.
    @pl.when(ki < qi)
    def _():
        process(False)

    # Diagonal block: apply the causal mask.
    @pl.when(ki == qi)
    def _():
        process(True)

    # Blocks with ki > qi are fully masked: no compute, and their K/V DMA is
    # elided by the clamped index_map in the wrapper.

    @pl.when(ki == pl.num_programs(1) - 1)
    def _():
        out = acc_sc[...] * pl.reciprocal(l_sc[...], approx=True)   # (H*tq, D)
        o_ref[...] = jnp.concatenate(
            [out[h * tq:(h + 1) * tq, :] for h in range(num_heads)],
            axis=1).astype(o_ref.dtype)


def mqa_attention(qkv, num_heads, head_size):
    """Causal multi-query attention reading q/k/v directly from the fused qkv
    buffer (T, (H+2)*D) via BlockSpec column offsets. All heads are processed
    in a single grid step so shared K/V is DMA'd once per (qi, ki).
    Returns (T, H*D)."""
    T = qkv.shape[0]
    D = head_size
    HD = num_heads * D
    tq = _pick_tile(T, 256, 16)
    tk = tq            # online softmax + diagonal-band masking require tq == tk
    grid = (T // tq, T // tk)

    q_spec = pl.BlockSpec((tq, HD), lambda qi, ki: (qi, 0))
    # Clamp the K/V row block for fully-masked (skipped) steps so Pallas sees a
    # repeated block index and elides the redundant HBM copy.
    k_spec = pl.BlockSpec((tk, D),
                          lambda qi, ki: (jnp.minimum(ki, qi), num_heads))
    v_spec = pl.BlockSpec((tk, D),
                          lambda qi, ki: (jnp.minimum(ki, qi), num_heads + 1))

    R = tq * num_heads
    blocks = 2 * (tq * HD * 2) + 2 * (tk * D * 2)
    scratch = R * D * qkv.dtype.itemsize + 2 * R * 4 + R * D * 4
    vmem = _vmem_limit(2 * blocks + scratch)

    return pl.pallas_call(
        functools.partial(_mqa_flash_kernel, num_heads=num_heads,
                          head_size=head_size, tq=tq, tk=tk),
        out_shape=jax.ShapeDtypeStruct((T, HD), qkv.dtype),
        grid_spec=pltpu.PrefetchScalarGridSpec(
            num_scalar_prefetch=0,
            grid=grid,
            in_specs=[q_spec, k_spec, v_spec],
            out_specs=pl.BlockSpec((tq, HD), lambda qi, ki: (qi, 0)),
            scratch_shapes=[pltpu.VMEM((R, D), qkv.dtype),
                            pltpu.VMEM((R, 1), jnp.float32),
                            pltpu.VMEM((R, 1), jnp.float32),
                            pltpu.VMEM((R, D), jnp.float32)],
        ),
        compiler_params=pltpu.CompilerParams(
            dimension_semantics=("parallel", "arbitrary"),
            vmem_limit_bytes=vmem),
    )(qkv, qkv, qkv)


# ------------------------------ fused MLP ------------------------------

def _fused_mlp_kernel(x_ref, wfc_ref, bfc_ref, wproj_ref, bproj_ref, o_ref, acc_ref):
    f = pl.program_id(1)

    @pl.when(f == 0)
    def _():
        acc_ref[...] = jnp.zeros_like(acc_ref)

    h1 = jnp.dot(x_ref[...], wfc_ref[...], preferred_element_type=jnp.float32)
    h1 = jax.nn.gelu(h1 + bfc_ref[...].astype(jnp.float32), approximate=True)
    acc_ref[...] += jnp.dot(h1.astype(x_ref.dtype), wproj_ref[...],
                            preferred_element_type=jnp.float32)

    @pl.when(f == pl.num_programs(1) - 1)
    def _():
        o_ref[...] = (acc_ref[...]
                      + bproj_ref[...].astype(jnp.float32)).astype(o_ref.dtype)


def _mlp_footprint(tm, tf, H):
    blocks = (tm * H * 2 + H * tf * 2 + tf * 2 + tf * H * 2 + H * 2 + tm * H * 2)
    return 2 * blocks + tm * H * 4 + tm * tf * 4


def fused_mlp(x, w_fc, b_fc, w_proj, b_proj):
    """gelu_tanh(x @ w_fc + b_fc) @ w_proj + b_proj, intermediate kept in VMEM."""
    T, H = x.shape
    F = w_fc.shape[1]
    tm = _pick_tile(T, 256, 16)
    tf = _pick_tile(F, 512, 128)
    # Re-derive tf so double-buffered weight tiles + accumulators also fit
    # within v7x's 64 MiB physical VMEM.
    while _mlp_footprint(tm, tf, H) > 48 * _MB:
        new_tf = _pick_tile(F, max(tf // 2, 128), 128)
        if new_tf >= tf:
            break
        tf = new_tf
    grid = (T // tm, F // tf)
    vmem = _vmem_limit(_mlp_footprint(tm, tf, H))

    return pl.pallas_call(
        _fused_mlp_kernel,
        out_shape=jax.ShapeDtypeStruct((T, H), x.dtype),
        grid_spec=pltpu.PrefetchScalarGridSpec(
            num_scalar_prefetch=0,
            grid=grid,
            in_specs=[
                pl.BlockSpec((tm, H), lambda i, f: (i, 0)),
                pl.BlockSpec((H, tf), lambda i, f: (0, f)),
                pl.BlockSpec((1, tf), lambda i, f: (0, f)),
                pl.BlockSpec((tf, H), lambda i, f: (f, 0)),
                pl.BlockSpec((1, H), lambda i, f: (0, 0)),
            ],
            out_specs=pl.BlockSpec((tm, H), lambda i, f: (i, 0)),
            scratch_shapes=[pltpu.VMEM((tm, H), jnp.float32)],
        ),
        compiler_params=pltpu.CompilerParams(
            dimension_semantics=("parallel", "arbitrary"),
            vmem_limit_bytes=vmem),
    )(x, w_fc, b_fc.reshape(1, F), w_proj, b_proj.reshape(1, H))


# ------------------------------ parameters ------------------------------

def init_params(key, *, vocab_size, max_pos, hidden, num_heads, num_layers,
                dtype=jnp.bfloat16):
    head_size = hidden // num_heads
    std = 0.02
    sm_scale = head_size ** -0.5
    qcols = num_heads * head_size
    ks = jax.random.split(key, 2 + 6 * num_layers)

    def rnd(k, shape):
        return (jax.random.normal(k, shape, jnp.float32) * std).astype(dtype)

    params = {
        "wte": rnd(ks[0], (vocab_size, hidden)),
        "wpe": rnd(ks[1], (max_pos, hidden)),
        "ln_f_g": jnp.ones((hidden,), dtype),
        "ln_f_b": jnp.zeros((hidden,), dtype),
        "layers": [],
    }
    # tied lm_head: store the transpose once (hidden, vocab) instead of per-call .T
    params["wte_t"] = jnp.asarray(params["wte"].T)

    idx = 2
    for _ in range(num_layers):
        k0, k1, k2, k3, k4, k5 = ks[idx:idx + 6]
        idx += 6
        w_qkv = rnd(k0, (hidden, (num_heads + 2) * head_size))
        b_qkv = rnd(k1, ((num_heads + 2) * head_size,))
        # Fold the softmax scale into the Q columns of the qkv projection
        # (mathematically identical to scaling the attention scores).
        w_qkv = w_qkv.at[:, :qcols].multiply(sm_scale)
        b_qkv = b_qkv.at[:qcols].multiply(sm_scale)
        layer = {
            "ln1_g": jnp.ones((hidden,), dtype),
            "ln1_b": jnp.zeros((hidden,), dtype),
            "ln2_g": jnp.ones((hidden,), dtype),
            "ln2_b": jnp.zeros((hidden,), dtype),
            # PyTorch c_attn weight is [(H+2)*D, hidden]; stored transposed here.
            "w_qkv": w_qkv,
            "b_qkv": b_qkv,
            "w_attn_proj": rnd(k2, (hidden, hidden)),
            "b_attn_proj": jnp.zeros((hidden,), dtype),
            "w_fc": rnd(k3, (hidden, 4 * hidden)),
            "b_fc": rnd(k4, (4 * hidden,)),
            "w_mlp_proj": rnd(k5, (4 * hidden, hidden)),
            "b_mlp_proj": jnp.zeros((hidden,), dtype),
        }
        params["layers"].append(layer)
    return params


# ------------------------------ forward pass ------------------------------

def flash_santacoder_forward(params, input_ids, position_ids, past_present_indices,
                             pre_allocate_past_size, *, num_heads, eps=1e-5,
                             lm_head_indices=None):
    # TODO(synk): only the single-sequence prefill path is implemented
    # (past_key_values=None); the varlen decode path (start_seq_q/end_seq_q,
    # in-place scatter into a live cache) is not translated.
    hidden = params["wte"].shape[1]
    head_size = hidden // num_heads

    # wte(input_ids) + wpe(position_ids)   (embedding gathers = glue)
    h = (jnp.take(params["wte"], input_ids, axis=0)
         + jnp.take(params["wpe"], position_ids, axis=0))
    # Pad the token dim so all kernels see well-aligned row tiles; padded rows
    # never influence real rows (causal mask) and are sliced off at the end.
    h, T_real = _pad_tokens(h, 128)

    residual = None
    presents = []
    for layer in params["layers"]:
        # ln_1 (residual-add fused; first layer takes the no-residual fast path)
        ln1_out, residual = layer_norm(h, layer["ln1_g"], layer["ln1_b"], eps, residual)

        # fused qkv projection; attention reads q/k/v straight from this buffer
        qkv = linear(ln1_out, layer["w_qkv"], layer["b_qkv"])
        kv = qkv[:T_real, num_heads * head_size:].reshape(T_real, 2, 1, head_size)
        presents.append(kv)                             # layer_past[...] = key_value

        attn = mqa_attention(qkv, num_heads, head_size)
        attn_out = linear(attn, layer["w_attn_proj"], layer["b_attn_proj"])

        # ln_2
        ln2_out, residual = layer_norm(attn_out, layer["ln2_g"], layer["ln2_b"], eps, residual)

        # fused MLP (c_fc + gelu_tanh + c_proj, intermediate never touches HBM)
        h = fused_mlp(ln2_out, layer["w_fc"], layer["b_fc"],
                      layer["w_mlp_proj"], layer["b_mlp_proj"])

    hidden_states, _ = layer_norm(h, params["ln_f_g"], params["ln_f_b"], eps, residual)
    hidden_states = hidden_states[:T_real]

    # scatter present KV into the pre-allocated cache (glue; prefill-only)
    present = jnp.stack(presents, axis=1)               # (T, n_layers, 2, 1, head_size)
    past_key_values = jnp.zeros(
        (pre_allocate_past_size,) + present.shape[1:], present.dtype
    ).at[past_present_indices].set(present)

    if lm_head_indices is not None:
        hidden_states = hidden_states[lm_head_indices]

    # tied lm_head: logits = hidden @ wte^T (pre-transposed, no bias), f32 out,
    # large vocab tiles to cut sequential grid-step overhead on the big GEMM.
    logits = linear(hidden_states, params["wte_t"], None,
                    out_dtype=jnp.float32, tile_n=2048, tile_k=1024)
    return logits, past_key_values


# ------------------------------ main ------------------------------

if __name__ == "__main__":
    VOCAB, MAX_POS, HIDDEN, NUM_HEADS, NUM_LAYERS = 512, 128, 256, 2, 2
    T = 128
    key = jax.random.PRNGKey(0)
    pkey, ikey = jax.random.split(key)

    params = init_params(pkey, vocab_size=VOCAB, max_pos=MAX_POS, hidden=HIDDEN,
                         num_heads=NUM_HEADS, num_layers=NUM_LAYERS)

    input_ids = jax.random.randint(ikey, (T,), 0, VOCAB, dtype=jnp.int32)
    position_ids = jnp.arange(T, dtype=jnp.int32)
    past_present_indices = jnp.arange(T, dtype=jnp.int32)
    pre_allocate_past_size = 160

    logits, past_kv = flash_santacoder_forward(
        params, input_ids, position_ids, past_present_indices,
        pre_allocate_past_size, num_heads=NUM_HEADS)
    jax.block_until_ready((logits, past_kv))

    assert logits.shape == (T, VOCAB), logits.shape
    assert logits.dtype == jnp.float32, logits.dtype
    assert past_kv.shape == (pre_allocate_past_size, NUM_LAYERS, 2, 1,
                             HIDDEN // NUM_HEADS), past_kv.shape
    assert bool(jnp.isfinite(logits).all())
    print("KERNEL_OK")
</pallas_src>

<mosaic_0001>
module attributes {stable_mosaic.version = 11 : i64} {
  func.func @_layernorm_nores_kernel(%arg0: i32, %arg1: memref<128x256xbf16, #tpu.memory_space<vmem>>, %arg2: memref<1x256xbf16, #tpu.memory_space<vmem>>, %arg3: memref<1x256xbf16, #tpu.memory_space<vmem>>, %arg4: memref<128x256xbf16, #tpu.memory_space<vmem>>) attributes {dimension_semantics = [#tpu.dimension_semantics<parallel>], iteration_bounds = array<i64: 1>, scalar_prefetch = 0 : i64, scratch_operands = 0 : i64, tpu.core_type = #tpu.core_type<tc>, window_params = [{transform_indices = @transform_0, window_bounds = array<i64: 128, 256>}, {pipeline_mode = #tpu.pipeline_mode<synchronous>, transform_indices = @transform_1, window_bounds = array<i64: 1, 256>}, {pipeline_mode = #tpu.pipeline_mode<synchronous>, transform_indices = @transform_2, window_bounds = array<i64: 1, 256>}, {transform_indices = @transform_3, window_bounds = array<i64: 128, 256>}]} {
    %c0 = arith.constant 0 : index
    %c0_0 = arith.constant 0 : index
    %0 = vector.load %arg1[%c0, %c0_0] : memref<128x256xbf16, #tpu.memory_space<vmem>>, vector<128x256xbf16>
    %1 = arith.extf %0 : vector<128x256xbf16> to vector<128x256xf32>
    %cst = arith.constant dense<0.000000e+00> : vector<128xf32>
    %2 = vector.multi_reduction <add>, %1, %cst [1] : vector<128x256xf32> to vector<128xf32>
    %3 = vector.shape_cast %2 : vector<128xf32> to vector<128x1xf32>
    %cst_1 = arith.constant 2.560000e+02 : f32
    %4 = vector.broadcast %cst_1 : f32 to vector<128x1xf32>
    %5 = arith.divf %3, %4 : vector<128x1xf32>
    %6 = vector.broadcast %5 : vector<128x1xf32> to vector<128x256xf32>
    %7 = arith.subf %1, %6 : vector<128x256xf32>
    %8 = arith.mulf %7, %7 : vector<128x256xf32>
    %cst_2 = arith.constant dense<0.000000e+00> : vector<128xf32>
    %9 = vector.multi_reduction <add>, %8, %cst_2 [1] : vector<128x256xf32> to vector<128xf32>
    %10 = vector.shape_cast %9 : vector<128xf32> to vector<128x1xf32>
    %cst_3 = arith.constant 2.560000e+02 : f32
    %11 = vector.broadcast %cst_3 : f32 to vector<128x1xf32>
    %12 = arith.divf %10, %11 : vector<128x1xf32>
    %cst_4 = arith.constant 9.99999974E-6 : f32
    %13 = vector.broadcast %cst_4 : f32 to vector<128x1xf32>
    %14 = arith.addf %12, %13 : vector<128x1xf32>
    %15 = math.rsqrt %14 : vector<128x1xf32>
    %16 = vector.broadcast %15 : vector<128x1xf32> to vector<128x256xf32>
    %17 = arith.mulf %7, %16 : vector<128x256xf32>
    %c0_5 = arith.constant 0 : index
    %c0_6 = arith.constant 0 : index
    %18 = vector.load %arg2[%c0_5, %c0_6] : memref<1x256xbf16, #tpu.memory_space<vmem>>, vector<1x256xbf16>
    %19 = arith.extf %18 : vector<1x256xbf16> to vector<1x256xf32>
    %20 = vector.broadcast %19 : vector<1x256xf32> to vector<128x256xf32>
    %21 = arith.mulf %17, %20 : vector<128x256xf32>
    %c0_7 = arith.constant 0 : index
    %c0_8 = arith.constant 0 : index
    %22 = vector.load %arg3[%c0_7, %c0_8] : memref<1x256xbf16, #tpu.memory_space<vmem>>, vector<1x256xbf16>
    %23 = arith.extf %22 : vector<1x256xbf16> to vector<1x256xf32>
    %24 = vector.broadcast %23 : vector<1x256xf32> to vector<128x256xf32>
    %25 = arith.addf %21, %24 : vector<128x256xf32>
    %26 = arith.truncf %25 : vector<128x256xf32> to vector<128x256xbf16>
    %c0_9 = arith.constant 0 : index
    %c0_10 = arith.constant 0 : index
    %27 = vector.load %arg4[%c0_9, %c0_10] : memref<128x256xbf16, #tpu.memory_space<vmem>>, vector<128x256xbf16>
    tpu.vector_store %arg4[%c0_9, %c0_10], %26 {strides = array<i32>} : memref<128x256xbf16, #tpu.memory_space<vmem>>, vector<128x256xbf16>,
    return
  }
  func.func @transform_0(%arg0: i32) -> (i32, i32) {
    %c0_i32 = arith.constant 0 : i32
    %c0_i32_0 = arith.constant 0 : i32
    return %arg0, %c0_i32 : i32, i32
  }
  func.func @transform_1(%arg0: i32) -> (i32, i32) {
    %c0_i32 = arith.constant 0 : i32
    %c0_i32_0 = arith.constant 0 : i32
    %c0_i32_1 = arith.constant 0 : i32
    return %c0_i32, %c0_i32_0 : i32, i32
  }
  func.func @transform_2(%arg0: i32) -> (i32, i32) {
    %c0_i32 = arith.constant 0 : i32
    %c0_i32_0 = arith.constant 0 : i32
    %c0_i32_1 = arith.constant 0 : i32
    return %c0_i32, %c0_i32_0 : i32, i32
  }
  func.func @transform_3(%arg0: i32) -> (i32, i32) {
    %c0_i32 = arith.constant 0 : i32
    %c0_i32_0 = arith.constant 0 : i32
    return %arg0, %c0_i32 : i32, i32
  }
}

</mosaic_0001>

<llo_original>
// kernel: tpu_custom_call.1
$region0: #{tpu_custom_call.1}
  #allocation0 [shape = 'u32[]', space=smem, size = 0x4, offset = 0x4, fixed_abs, tag = 'smem constant byte address 0x4 - core index']
  #allocation1 [shape = 'u32[72,128]{1,0:T(1,128)}', space=vmem, size = 0x9000, scoped, tag = 'internal scratch']
  %s0 = inlined_call_operand.hbm [shape: bf16[128,256], index: 0, kind: input, shape index: {}]
  %s1 = inlined_call_operand.hbm [shape: bf16[1,256], index: 1, kind: input, shape index: {}]
  %s2 = inlined_call_operand.hbm [shape: bf16[1,256], index: 2, kind: input, shape index: {}]
  %s3 = inlined_call_operand.hbm [shape: bf16[128,256], index: 3, kind: output, shape index: {}]
  %s4 = sld [smem:[#allocation0]]
  $region34: #{tpu_custom_call.1} parent=0
    _
  %s6 = ssub.s32 1, %s4
  %s7 = scalar_select 0, %s6, %s4
  $region1: #{tpu_custom_call.1} parent=0
    #allocation2 [shape = 'u8[65536]{0}', space=vmem, size = 0x10000, scoped, tag = 'input window, operand 0, single buffered']
    #allocation3 [shape = 's32[1]{0}', space=sflag, size = 0x4, scoped, tag = 'scoped memory for tpu_custom_call.1']
    #allocation4 [shape = 's32[1]{0}', space=sflag, size = 0x4, scoped, tag = 'scoped memory for tpu_custom_call.1']
    #allocation5 [shape = 'u8[1024]{0}', space=vmem, size = 0x400, scoped, tag = 'input window, operand 1, single buffered']
    #allocation6 [shape = 's32[1]{0}', space=sflag, size = 0x4, scoped, tag = 'scoped memory for tpu_custom_call.1']
    #allocation7 [shape = 'u8[1024]{0}', space=vmem, size = 0x400, scoped, tag = 'input window, operand 2, single buffered']
    #allocation8 [shape = 'u8[65536]{0}', space=vmem, size = 0x10000, scoped, tag = 'output window, operand 0, single buffered']
    %8 = vsyncpa [#allocation3], 0
    %9 = vsyncpa [#allocation6], 0
    %10 = vsyncpa [#allocation4], 0
    // Predicated region
    $region2: #{tpu_custom_call.1} parent=1 // pred_check
      _
    $region3: #{tpu_custom_call.1} parent=1 // pred_check_branch
      %12 = sbr.rel (0) target = $region5
    $region4: #{tpu_custom_call.1} parent=1 // pred_region
      %14 = vsyncadd [#allocation3], 0
      %s15 = sshll.u32 %s0, 4
      %s16 = int_to_ptr.hbm [resolvable:$true] %s15
      %s17 = sshll.u32 [#allocation2], 4
      %s18 = int_to_ptr.vmem [resolvable:$true] %s17
      %23 = dma.hbm_to_vmem [thread:$0]  %s16, 2048, %s18, [#allocation3], 128, 128, 8
    $region5: #{tpu_custom_call.1} parent=1 // pred_fallthru
      _
    // Predicated region
    $region6: #{tpu_custom_call.1} parent=1 // pred_check
      _
    $region7: #{tpu_custom_call.1} parent=1 // pred_check_branch
      %25 = sbr.rel (0) target = $region9
    $region8: #{tpu_custom_call.1} parent=1 // pred_region
      %27 = vsyncadd [#allocation6], 0
      %s29 = sshll.u32 %s1, 4
      %s30 = int_to_ptr.hbm [resolvable:$true] %s29
      %s31 = sshll.u32 [#allocation5], 4
      %s32 = int_to_ptr.vmem [resolvable:$true] %s31
      %34 = dma.hbm_to_vmem [thread:$0]  %s30, 32, %s32, [#allocation6]
    $region9: #{tpu_custom_call.1} parent=1 // pred_fallthru
      _
    // Predicated region
    $region10: #{tpu_custom_call.1} parent=1 // pred_check
      _
    $region11: #{tpu_custom_call.1} parent=1 // pred_check_branch
      %36 = sbr.rel (0) target = $region13
    $region12: #{tpu_custom_call.1} parent=1 // pred_region
      %38 = vsyncadd [#allocation6], 0
      %s40 = sshll.u32 %s2, 4
      %s41 = int_to_ptr.hbm [resolvable:$true] %s40
      %s42 = sshll.u32 [#allocation7], 4
      %s43 = int_to_ptr.vmem [resolvable:$true] %s42
      %45 = dma.hbm_to_vmem [thread:$0]  %s41, 32, %s43, [#allocation6]
    $region13: #{tpu_custom_call.1} parent=1 // pred_fallthru
      _
    // Predicated region
    $region14: #{tpu_custom_call.1} parent=1 // pred_check
      _
    $region15: #{tpu_custom_call.1} parent=1 // pred_check_branch
      %47 = sbr.rel (0) target = $region17
    $region16: #{tpu_custom_call.1} parent=1 // pred_region
      %49 = dma.done [#allocation3], 2048
    $region17: #{tpu_custom_call.1} parent=1 // pred_fallthru
      _
    // Predicated region
    $region18: #{tpu_custom_call.1} parent=1 // pred_check
      _
    $region19: #{tpu_custom_call.1} parent=1 // pred_check_branch
      %51 = sbr.rel (0) target = $region21
    $region20: #{tpu_custom_call.1} parent=1 // pred_region
      %53 = dma.done [#allocation6], 32
    $region21: #{tpu_custom_call.1} parent=1 // pred_fallthru
      _
    // Predicated region
    $region22: #{tpu_custom_call.1} parent=1 // pred_check
      _
    $region23: #{tpu_custom_call.1} parent=1 // pred_check_branch
      %55 = sbr.rel (0) target = $region25
    $region24: #{tpu_custom_call.1} parent=1 // pred_region
      %57 = dma.done [#allocation6], 32
    $region25: #{tpu_custom_call.1} parent=1 // pred_fallthru
      _
    %v58 = vld [vmem:[#allocation2] sm:$0xff]
    %v59 = vld [vmem:[#allocation2 + $0x8] sm:$0xff]
    %v60 = vld [vmem:[#allocation2 + $0x10] sm:$0xff]
    %v61 = vld [vmem:[#allocation2 + $0x18] sm:$0xff]
    %v62 = vld [vmem:[#allocation2 + $0x20] sm:$0xff]
    %v63 = vld [vmem:[#allocation2 + $0x28] sm:$0xff]
    %v64 = vld [vmem:[#allocation2 + $0x30] sm:$0xff]
    %v65 = vld [vmem:[#allocation2 + $0x38] sm:$0xff]
    %v66 = vld [vmem:[#allocation2 + $0x40] sm:$0xff]
    %v67 = vld [vmem:[#allocation2 + $0x48] sm:$0xff]
    %v68 = vld [vmem:[#allocation2 + $0x50] sm:$0xff]
    %v69 = vld [vmem:[#allocation2 + $0x58] sm:$0xff]
    %v70 = vld [vmem:[#allocation2 + $0x60] sm:$0xff]
    %v71 = vld [vmem:[#allocation2 + $0x68] sm:$0xff]
    %v72 = vld [vmem:[#allocation2 + $0x70] sm:$0xff]
    %v73 = vld [vmem:[#allocation2 + $0x78] sm:$0xff]
    %v74 = vunpack.c.l.bf16 %v58
    %v75 = vunpack.c.h.bf16 %v58
    %v76 = vunpack.c.l.bf16 %v59
    %v77 = vunpack.c.h.bf16 %v59
    %v78 = vunpack.c.l.bf16 %v60
    %v79 = vunpack.c.h.bf16 %v60
    %v80 = vunpack.c.l.bf16 %v61
    %v81 = vunpack.c.h.bf16 %v61
    %v82 = vunpack.c.l.bf16 %v62
    %v83 = vunpack.c.h.bf16 %v62
    %v84 = vunpack.c.l.bf16 %v63
    %v85 = vunpack.c.h.bf16 %v63
    %v86 = vunpack.c.l.bf16 %v64
    %v87 = vunpack.c.h.bf16 %v64
    %v88 = vunpack.c.l.bf16 %v65
    %v89 = vunpack.c.h.bf16 %v65
    %v90 = vunpack.c.l.bf16 %v66
    %v91 = vunpack.c.h.bf16 %v66
    %v92 = vunpack.c.l.bf16 %v67
    %v93 = vunpack.c.h.bf16 %v67
    %v94 = vunpack.c.l.bf16 %v68
    %v95 = vunpack.c.h.bf16 %v68
    %v96 = vunpack.c.l.bf16 %v69
    %v97 = vunpack.c.h.bf16 %v69
    %v98 = vunpack.c.l.bf16 %v70
    %v99 = vunpack.c.h.bf16 %v70
    %v100 = vunpack.c.l.bf16 %v71
    %v101 = vunpack.c.h.bf16 %v71
    %v102 = vunpack.c.l.bf16 %v72
    %v103 = vunpack.c.h.bf16 %v72
    %v104 = vunpack.c.l.bf16 %v73
    %v105 = vunpack.c.h.bf16 %v73
    %v106 = vadd.f32 %v74, %v75
    %107 = vadd.xlane.f32.xlu0 %v106
    %v108 = vpop.xlane.xlu0 %107
    %v109 = vadd.f32 %v76, %v77
    %110 = vadd.xlane.f32.xlu0 %v109
    %v111 = vpop.xlane.xlu0 %110
    %v112 = vadd.f32 %v78, %v79
    %113 = vadd.xlane.f32.xlu0 %v112
    %v114 = vpop.xlane.xlu0 %113
    %v115 = vadd.f32 %v80, %v81
    %116 = vadd.xlane.f32.xlu0 %v115
    %v117 = vpop.xlane.xlu0 %116
    %v118 = vadd.f32 %v82, %v83
    %119 = vadd.xlane.f32.xlu0 %v118
    %v120 = vpop.xlane.xlu0 %119
    %v121 = vadd.f32 %v84, %v85
    %122 = vadd.xlane.f32.xlu0 %v121
    %v123 = vpop.xlane.xlu0 %122
    %v124 = vadd.f32 %v86, %v87
    %125 = vadd.xlane.f32.xlu0 %v124
    %v126 = vpop.xlane.xlu0 %125
    %v127 = vadd.f32 %v88, %v89
    %128 = vadd.xlane.f32.xlu0 %v127
    %v129 = vpop.xlane.xlu0 %128
    %v130 = vadd.f32 %v90, %v91
    %131 = vadd.xlane.f32.xlu0 %v130
    %v132 = vpop.xlane.xlu0 %131
    %v133 = vadd.f32 %v92, %v93
    %134 = vadd.xlane.f32.xlu0 %v133
    %v135 = vpop.xlane.xlu0 %134
    %v136 = vadd.f32 %v94, %v95
    %137 = vadd.xlane.f32.xlu0 %v136
    %v138 = vpop.xlane.xlu0 %137
    %v139 = vadd.f32 %v96, %v97
    %140 = vadd.xlane.f32.xlu0 %v139
    %v141 = vpop.xlane.xlu0 %140
    %v142 = vadd.f32 %v98, %v99
    %143 = vadd.xlane.f32.xlu0 %v142
    %v144 = vpop.xlane.xlu0 %143
    %v145 = vadd.f32 %v100, %v101
    %146 = vadd.xlane.f32.xlu0 %v145
    %v147 = vpop.xlane.xlu0 %146
    %v148 = vadd.f32 %v102, %v103
    %149 = vadd.xlane.f32.xlu0 %v148
    %v150 = vpop.xlane.xlu0 %149
    %v151 = vadd.f32 %v104, %v105
    %152 = vadd.xlane.f32.xlu0 %v151
    %v153 = vpop.xlane.xlu0 %152
    %v154 = vrcp.pop 256.0
    %v155 = vmul.f32 256.0, %v154
    %v156 = vsub.f32 1.0, %v155
    %v157 = vmul.f32 %v154, %v156
    %v158 = vadd.f32 %v154, %v157
    %vm159 = vweird.f32 %v154
    %v160 = vsel %vm159, %v154, %v158
    %v161 = vmul.f32 %v108, %v160
    %v162 = vmul.f32 %v111, %v160
    %v163 = vmul.f32 %v114, %v160
    %v164 = vmul.f32 %v117, %v160
    %v165 = vmul.f32 %v120, %v160
    %v166 = vmul.f32 %v123, %v160
    %v167 = vmul.f32 %v126, %v160
    %v168 = vmul.f32 %v129, %v160
    %v169 = vmul.f32 %v132, %v160
    %v170 = vmul.f32 %v135, %v160
    %v171 = vmul.f32 %v138, %v160
    %v172 = vmul.f32 %v141, %v160
    %v173 = vmul.f32 %v144, %v160
    %v174 = vmul.f32 %v147, %v160
    %v175 = vmul.f32 %v150, %v160
    %v176 = vmul.f32 %v153, %v160
    %v177 = vsub.f32 %v74, %v161
    %v178 = vsub.f32 %v75, %v161
    %v179 = vsub.f32 %v76, %v162
    %v180 = vsub.f32 %v77, %v162
    %v181 = vsub.f32 %v78, %v163
    %v182 = vsub.f32 %v79, %v163
    %v183 = vsub.f32 %v80, %v164
    %v184 = vsub.f32 %v81, %v164
    %v185 = vsub.f32 %v82, %v165
    %v186 = vsub.f32 %v83, %v165
    %v187 = vsub.f32 %v84, %v166
    %v188 = vsub.f32 %v85, %v166
    %v189 = vsub.f32 %v86, %v167
    %v190 = vsub.f32 %v87, %v167
    %v191 = vsub.f32 %v88, %v168
    %v192 = vsub.f32 %v89, %v168
    %v193 = vsub.f32 %v90, %v169
    %v194 = vsub.f32 %v91, %v169
    %v195 = vsub.f32 %v92, %v170
    %v196 = vsub.f32 %v93, %v170
    %v197 = vsub.f32 %v94, %v171
    %v198 = vsub.f32 %v95, %v171
    %v199 = vsub.f32 %v96, %v172
    %v200 = vsub.f32 %v97, %v172
    %v201 = vsub.f32 %v98, %v173
    %v202 = vsub.f32 %v99, %v173
    %v203 = vsub.f32 %v100, %v174
    %v204 = vsub.f32 %v101, %v174
    %v205 = vsub.f32 %v102, %v175
    %v206 = vsub.f32 %v103, %v175
    %v207 = vsub.f32 %v104, %v176
    %v208 = vsub.f32 %v105, %v176
    %v209 = vmul.f32 %v177, %v177
    %v210 = vmul.f32 %v178, %v178
    %v211 = vmul.f32 %v179, %v179
    %v212 = vmul.f32 %v180, %v180
    %v213 = vmul.f32 %v181, %v181
    %v214 = vmul.f32 %v182, %v182
    %v215 = vmul.f32 %v183, %v183
    %v216 = vmul.f32 %v184, %v184
    %v217 = vmul.f32 %v185, %v185
    %v218 = vmul.f32 %v186, %v186
    %v219 = vmul.f32 %v187, %v187
    %v220 = vmul.f32 %v188, %v188
    %v221 = vmul.f32 %v189, %v189
    %v222 = vmul.f32 %v190, %v190
    %v223 = vmul.f32 %v191, %v191
    %v224 = vmul.f32 %v192, %v192
    %v225 = vmul.f32 %v193, %v193
    %v226 = vmul.f32 %v194, %v194
    %v227 = vmul.f32 %v195, %v195
    %v228 = vmul.f32 %v196, %v196
    %v229 = vmul.f32 %v197, %v197
    %v230 = vmul.f32 %v198, %v198
    %v231 = vmul.f32 %v199, %v199
    %v232 = vmul.f32 %v200, %v200
    %v233 = vmul.f32 %v201, %v201
    %v234 = vmul.f32 %v202, %v202
    %v235 = vmul.f32 %v203, %v203
    %v236 = vmul.f32 %v204, %v204
    %v237 = vmul.f32 %v205, %v205
    %v238 = vmul.f32 %v206, %v206
    %v239 = vmul.f32 %v207, %v207
    %v240 = vmul.f32 %v208, %v208
    %v241 = vadd.f32 %v209, %v210
    %242 = vadd.xlane.f32.xlu0 %v241
    %v243 = vpop.xlane.xlu0 %242
    %v244 = vadd.f32 %v211, %v212
    %245 = vadd.xlane.f32.xlu0 %v244
    %v246 = vpop.xlane.xlu0 %245
    %v247 = vadd.f32 %v213, %v214
    %248 = vadd.xlane.f32.xlu0 %v247
    %v249 = vpop.xlane.xlu0 %248
    %v250 = vadd.f32 %v215, %v216
    %251 = vadd.xlane.f32.xlu0 %v250
    %v252 = vpop.xlane.xlu0 %251
    %v253 = vadd.f32 %v217, %v218
    %254 = vadd.xlane.f32.xlu0 %v253
    %v255 = vpop.xlane.xlu0 %254
    %v256 = vadd.f32 %v219, %v220
    %257 = vadd.xlane.f32.xlu0 %v256
    %v258 = vpop.xlane.xlu0 %257
    %v259 = vadd.f32 %v221, %v222
    %260 = vadd.xlane.f32.xlu0 %v259
    %v261 = vpop.xlane.xlu0 %260
    %v262 = vadd.f32 %v223, %v224
    %263 = vadd.xlane.f32.xlu0 %v262
    %v264 = vpop.xlane.xlu0 %263
    %v265 = vadd.f32 %v225, %v226
    %266 = vadd.xlane.f32.xlu0 %v265
    %v267 = vpop.xlane.xlu0 %266
    %v268 = vadd.f32 %v227, %v228
    %269 = vadd.xlane.f32.xlu0 %v268
    %v270 = vpop.xlane.xlu0 %269
    %v271 = vadd.f32 %v229, %v230
    %272 = vadd.xlane.f32.xlu0 %v271
    %v273 = vpop.xlane.xlu0 %272
    %v274 = vadd.f32 %v231, %v232
    %275 = vadd.xlane.f32.xlu0 %v274
    %v276 = vpop.xlane.xlu0 %275
    %v277 = vadd.f32 %v233, %v234
    %278 = vadd.xlane.f32.xlu0 %v277
    %v279 = vpop.xlane.xlu0 %278
    %v280 = vadd.f32 %v235, %v236
    %281 = vadd.xlane.f32.xlu0 %v280
    %v282 = vpop.xlane.xlu0 %281
    %v283 = vadd.f32 %v237, %v238
    %284 = vadd.xlane.f32.xlu0 %v283
    %v285 = vpop.xlane.xlu0 %284
    %v286 = vadd.f32 %v239, %v240
    %287 = vadd.xlane.f32.xlu0 %v286
    %v288 = vpop.xlane.xlu0 %287
    %v289 = vmul.f32 %v243, %v160
    %v290 = vmul.f32 %v246, %v160
    %v291 = vmul.f32 %v249, %v160
    %v292 = vmul.f32 %v252, %v160
    %v293 = vmul.f32 %v255, %v160
    %v294 = vmul.f32 %v258, %v160
    %v295 = vmul.f32 %v261, %v160
    %v296 = vmul.f32 %v264, %v160
    %v297 = vmul.f32 %v267, %v160
    %v298 = vmul.f32 %v270, %v160
    %v299 = vmul.f32 %v273, %v160
    %v300 = vmul.f32 %v276, %v160
    %v301 = vmul.f32 %v279, %v160
    %v302 = vmul.f32 %v282, %v160
    %v303 = vmul.f32 %v285, %v160
    %v304 = vmul.f32 %v288, %v160
    %v305 = vadd.f32 %v289, 1e-05
    %v306 = vadd.f32 %v290, 1e-05
    %v307 = vadd.f32 %v291, 1e-05
    %v308 = vadd.f32 %v292, 1e-05
    %v309 = vadd.f32 %v293, 1e-05
    %v310 = vadd.f32 %v294, 1e-05
    %v311 = vadd.f32 %v295, 1e-05
    %v312 = vadd.f32 %v296, 1e-05
    %v313 = vadd.f32 %v297, 1e-05
    %v314 = vadd.f32 %v298, 1e-05
    %v315 = vadd.f32 %v299, 1e-05
    %v316 = vadd.f32 %v300, 1e-05
    %v317 = vadd.f32 %v301, 1e-05
    %v318 = vadd.f32 %v302, 1e-05
    %v319 = vadd.f32 %v303, 1e-05
    %v320 = vadd.f32 %v304, 1e-05
    %v321 = vrsqrt.pop %v305
    %v322 = vmul.f32 %v321, %v305
    %v323 = vmul.f32 %v322, %v321
    %v324 = vmul.f32 0.5, %v323
    %v325 = vsub.f32 1.5, %v324
    %v326 = vmul.f32 %v321, %v325
    %vm327 = vweird.f32 %v305
    %vm328 = vweird.f32 %v321
    %vm329 = vmor %vm327, %vm328
    %v330 = vsel %vm329, %v321, %v326
    %v331 = vrsqrt.pop %v306
    %v332 = vmul.f32 %v331, %v306
    %v333 = vmul.f32 %v332, %v331
    %v334 = vmul.f32 0.5, %v333
    %v335 = vsub.f32 1.5, %v334
    %v336 = vmul.f32 %v331, %v335
    %vm337 = vweird.f32 %v306
    %vm338 = vweird.f32 %v331
    %vm339 = vmor %vm337, %vm338
    %v340 = vsel %vm339, %v331, %v336
    %v341 = vrsqrt.pop %v307
    %v342 = vmul.f32 %v341, %v307
    %v343 = vmul.f32 %v342, %v341
    %v344 = vmul.f32 0.5, %v343
    %v345 = vsub.f32 1.5, %v344
    %v346 = vmul.f32 %v341, %v345
    %vm347 = vweird.f32 %v307
    %vm348 = vweird.f32 %v341
    %vm349 = vmor %vm347, %vm348
    %v350 = vsel %vm349, %v341, %v346
    %v351 = vrsqrt.pop %v308
    %v352 = vmul.f32 %v351, %v308
    %v353 = vmul.f32 %v352, %v351
    %v354 = vmul.f32 0.5, %v353
    %v355 = vsub.f32 1.5, %v354
    %v356 = vmul.f32 %v351, %v355
    %vm357 = vweird.f32 %v308
    %vm358 = vweird.f32 %v351
    %vm359 = vmor %vm357, %vm358
    %v360 = vsel %vm359, %v351, %v356
    %v361 = vrsqrt.pop %v309
    %v362 = vmul.f32 %v361, %v309
    %v363 = vmul.f32 %v362, %v361
    %v364 = vmul.f32 0.5, %v363
    %v365 = vsub.f32 1.5, %v364
    %v366 = vmul.f32 %v361, %v365
    %vm367 = vweird.f32 %v309
    %vm368 = vweird.f32 %v361
    %vm369 = vmor %vm367, %vm368
    %v370 = vsel %vm369, %v361, %v366
    %v371 = vrsqrt.pop %v310
    %v372 = vmul.f32 %v371, %v310
    %v373 = vmul.f32 %v372, %v371
    %v374 = vmul.f32 0.5, %v373
    %v375 = vsub.f32 1.5, %v374
    %v376 = vmul.f32 %v371, %v375
    %vm377 = vweird.f32 %v310
    %vm378 = vweird.f32 %v371
    %vm379 = vmor %vm377, %vm378
    %v380 = vsel %vm379, %v371, %v376
    %v381 = vrsqrt.pop %v311
    %v382 = vmul.f32 %v381, %v311
    %v383 = vmul.f32 %v382, %v381
    %v384 = vmul.f32 0.5, %v383
    %v385 = vsub.f32 1.5, %v384
    %v386 = vmul.f32 %v381, %v385
    %vm387 = vweird.f32 %v311
    %vm388 = vweird.f32 %v381
    %vm389 = vmor %vm387, %vm388
    %v390 = vsel %vm389, %v381, %v386
    %v391 = vrsqrt.pop %v312
    %v392 = vmul.f32 %v391, %v312
    %v393 = vmul.f32 %v392, %v391
    %v394 = vmul.f32 0.5, %v393
    %v395 = vsub.f32 1.5, %v394
    %v396 = vmul.f32 %v391, %v395
    %vm397 = vweird.f32 %v312
    %vm398 = vweird.f32 %v391
    %vm399 = vmor %vm397, %vm398
    %v400 = vsel %vm399, %v391, %v396
    %v401 = vrsqrt.pop %v313
    %v402 = vmul.f32 %v401, %v313
    %v403 = vmul.f32 %v402, %v401
    %v404 = vmul.f32 0.5, %v403
    %v405 = vsub.f32 1.5, %v404
    %v406 = vmul.f32 %v401, %v405
    %vm407 = vweird.f32 %v313
    %vm408 = vweird.f32 %v401
    %vm409 = vmor %vm407, %vm408
    %v410 = vsel %vm409, %v401, %v406
    %v411 = vrsqrt.pop %v314
    %v412 = vmul.f32 %v411, %v314
    %v413 = vmul.f32 %v412, %v411
    %v414 = vmul.f32 0.5, %v413
    %v415 = vsub.f32 1.5, %v414
    %v416 = vmul.f32 %v411, %v415
    %vm417 = vweird.f32 %v314
    %vm418 = vweird.f32 %v411
    %vm419 = vmor %vm417, %vm418
    %v420 = vsel %vm419, %v411, %v416
    %v421 = vrsqrt.pop %v315
    %v422 = vmul.f32 %v421, %v315
    %v423 = vmul.f32 %v422, %v421
    %v424 = vmul.f32 0.5, %v423
    %v425 = vsub.f32 1.5, %v424
    %v426 = vmul.f32 %v421, %v425
    %vm427 = vweird.f32 %v315
    %vm428 = vweird.f32 %v421
    %vm429 = vmor %vm427, %vm428
    %v430 = vsel %vm429, %v421, %v426
    %v431 = vrsqrt.pop %v316
    %v432 = vmul.f32 %v431, %v316
    %v433 = vmul.f32 %v432, %v431
    %v434 = vmul.f32 0.5, %v433
    %v435 = vsub.f32 1.5, %v434
    %v436 = vmul.f32 %v431, %v435
    %vm437 = vweird.f32 %v316
    %vm438 = vweird.f32 %v431
    %vm439 = vmor %vm437, %vm438
    %v440 = vsel %vm439, %v431, %v436
    %v441 = vrsqrt.pop %v317
    %v442 = vmul.f32 %v441, %v317
    %v443 = vmul.f32 %v442, %v441
    %v444 = vmul.f32 0.5, %v443
    %v445 = vsub.f32 1.5, %v444
    %v446 = vmul.f32 %v441, %v445
    %vm447 = vweird.f32 %v317
    %vm448 = vweird.f32 %v441
    %vm449 = vmor %vm447, %vm448
    %v450 = vsel %vm449, %v441, %v446
    %v451 = vrsqrt.pop %v318
    %v452 = vmul.f32 %v451, %v318
    %v453 = vmul.f32 %v452, %v451
    %v454 = vmul.f32 0.5, %v453
    %v455 = vsub.f32 1.5, %v454
    %v456 = vmul.f32 %v451, %v455
    %vm457 = vweird.f32 %v318
    %vm458 = vweird.f32 %v451
    %vm459 = vmor %vm457, %vm458
    %v460 = vsel %vm459, %v451, %v456
    %v461 = vrsqrt.pop %v319
    %v462 = vmul.f32 %v461, %v319
    %v463 = vmul.f32 %v462, %v461
    %v464 = vmul.f32 0.5, %v463
    %v465 = vsub.f32 1.5, %v464
    %v466 = vmul.f32 %v461, %v465
    %vm467 = vweird.f32 %v319
    %vm468 = vweird.f32 %v461
    %vm469 = vmor %vm467, %vm468
    %v470 = vsel %vm469, %v461, %v466
    %v471 = vrsqrt.pop %v320
    %v472 = vmul.f32 %v471, %v320
    %v473 = vmul.f32 %v472, %v471
    %v474 = vmul.f32 0.5, %v473
    %v475 = vsub.f32 1.5, %v474
    %v476 = vmul.f32 %v471, %v475
    %vm477 = vweird.f32 %v320
    %vm478 = vweird.f32 %v471
    %vm479 = vmor %vm477, %vm478
    %v480 = vsel %vm479, %v471, %v476
    %v481 = vmul.f32 %v177, %v330
    %v482 = vmul.f32 %v178, %v330
    %v483 = vmul.f32 %v179, %v340
    %v484 = vmul.f32 %v180, %v340
    %v485 = vmul.f32 %v181, %v350
    %v486 = vmul.f32 %v182, %v350
    %v487 = vmul.f32 %v183, %v360
    %v488 = vmul.f32 %v184, %v360
    %v489 = vmul.f32 %v185, %v370
    %v490 = vmul.f32 %v186, %v370
    %v491 = vmul.f32 %v187, %v380
    %v492 = vmul.f32 %v188, %v380
    %v493 = vmul.f32 %v189, %v390
    %v494 = vmul.f32 %v190, %v390
    %v495 = vmul.f32 %v191, %v400
    %v496 = vmul.f32 %v192, %v400
    %v497 = vmul.f32 %v193, %v410
    %v498 = vmul.f32 %v194, %v410
    %v499 = vmul.f32 %v195, %v420
    %v500 = vmul.f32 %v196, %v420
    %v501 = vmul.f32 %v197, %v430
    %v502 = vmul.f32 %v198, %v430
    %v503 = vmul.f32 %v199, %v440
    %v504 = vmul.f32 %v200, %v440
    %v505 = vmul.f32 %v201, %v450
    %v506 = vmul.f32 %v202, %v450
    %v507 = vmul.f32 %v203, %v460
    %v508 = vmul.f32 %v204, %v460
    %v509 = vmul.f32 %v205, %v470
    %v510 = vmul.f32 %v206, %v470
    %v511 = vmul.f32 %v207, %v480
    %v512 = vmul.f32 %v208, %v480
    %v513 = vld [vmem:[#allocation5] sm:$0x3]
    %v514 = vunpack.c.l.bf16 %v513
    %v516 = vperm.slane %v514, 0
    %v517 = vperm.slane %v514, 2
    %v520 = vperm.slane %v516, 0
    %v521 = vperm.slane %v517, 0
    %v522 = vmul.f32 %v481, %v520
    %v523 = vmul.f32 %v482, %v521
    %v524 = vmul.f32 %v483, %v520
    %v525 = vmul.f32 %v484, %v521
    %v526 = vmul.f32 %v485, %v520
    %v527 = vmul.f32 %v486, %v521
    %v528 = vmul.f32 %v487, %v520
    %v529 = vmul.f32 %v488, %v521
    %v530 = vmul.f32 %v489, %v520
    %v531 = vmul.f32 %v490, %v521
    %v532 = vmul.f32 %v491, %v520
    %v533 = vmul.f32 %v492, %v521
    %v534 = vmul.f32 %v493, %v520
    %v535 = vmul.f32 %v494, %v521
    %v536 = vmul.f32 %v495, %v520
    %v537 = vmul.f32 %v496, %v521
    %v538 = vmul.f32 %v497, %v520
    %v539 = vmul.f32 %v498, %v521
    %v540 = vmul.f32 %v499, %v520
    %v541 = vmul.f32 %v500, %v521
    %v542 = vmul.f32 %v501, %v520
    %v543 = vmul.f32 %v502, %v521
    %v544 = vmul.f32 %v503, %v520
    %v545 = vmul.f32 %v504, %v521
    %v546 = vmul.f32 %v505, %v520
    %v547 = vmul.f32 %v506, %v521
    %v548 = vmul.f32 %v507, %v520
    %v549 = vmul.f32 %v508, %v521
    %v550 = vmul.f32 %v509, %v520
    %v551 = vmul.f32 %v510, %v521
    %v552 = vmul.f32 %v511, %v520
    %v553 = vmul.f32 %v512, %v521
    %v554 = vld [vmem:[#allocation7] sm:$0x3]
    %v555 = vunpack.c.l.bf16 %v554
    %v557 = vperm.slane %v555, 0
    %v558 = vperm.slane %v555, 2
    %v561 = vperm.slane %v557, 0
    %v562 = vperm.slane %v558, 0
    %v563 = vadd.f32 %v522, %v561
    %v564 = vadd.f32 %v523, %v562
    %v565 = vadd.f32 %v524, %v561
    %v566 = vadd.f32 %v525, %v562
    %v567 = vadd.f32 %v526, %v561
    %v568 = vadd.f32 %v527, %v562
    %v569 = vadd.f32 %v528, %v561
    %v570 = vadd.f32 %v529, %v562
    %v571 = vadd.f32 %v530, %v561
    %v572 = vadd.f32 %v531, %v562
    %v573 = vadd.f32 %v532, %v561
    %v574 = vadd.f32 %v533, %v562
    %v575 = vadd.f32 %v534, %v561
    %v576 = vadd.f32 %v535, %v562
    %v577 = vadd.f32 %v536, %v561
    %v578 = vadd.f32 %v537, %v562
    %v579 = vadd.f32 %v538, %v561
    %v580 = vadd.f32 %v539, %v562
    %v581 = vadd.f32 %v540, %v561
    %v582 = vadd.f32 %v541, %v562
    %v583 = vadd.f32 %v542, %v561
    %v584 = vadd.f32 %v543, %v562
    %v585 = vadd.f32 %v544, %v561
    %v586 = vadd.f32 %v545, %v562
    %v587 = vadd.f32 %v546, %v561
    %v588 = vadd.f32 %v547, %v562
    %v589 = vadd.f32 %v548, %v561
    %v590 = vadd.f32 %v549, %v562
    %v591 = vadd.f32 %v550, %v561
    %v592 = vadd.f32 %v551, %v562
    %v593 = vadd.f32 %v552, %v561
    %v594 = vadd.f32 %v553, %v562
    %v595 = vpack.c.bf16 %v564, %v563
    %v596 = vpack.c.bf16 %v566, %v565
    %v597 = vpack.c.bf16 %v568, %v567
    %v598 = vpack.c.bf16 %v570, %v569
    %v599 = vpack.c.bf16 %v572, %v571
    %v600 = vpack.c.bf16 %v574, %v573
    %v601 = vpack.c.bf16 %v576, %v575
    %v602 = vpack.c.bf16 %v578, %v577
    %v603 = vpack.c.bf16 %v580, %v579
    %v604 = vpack.c.bf16 %v582, %v581
    %v605 = vpack.c.bf16 %v584, %v583
    %v606 = vpack.c.bf16 %v586, %v585
    %v607 = vpack.c.bf16 %v588, %v587
    %v608 = vpack.c.bf16 %v590, %v589
    %v609 = vpack.c.bf16 %v592, %v591
    %v610 = vpack.c.bf16 %v594, %v593
    %611 = vst [vmem:[#allocation8] sm:$0xff] %v595
    %612 = vst [vmem:[#allocation8 + $0x8] sm:$0xff] %v596
    %613 = vst [vmem:[#allocation8 + $0x10] sm:$0xff] %v597
    %614 = vst [vmem:[#allocation8 + $0x18] sm:$0xff] %v598
    %615 = vst [vmem:[#allocation8 + $0x20] sm:$0xff] %v599
    %616 = vst [vmem:[#allocation8 + $0x28] sm:$0xff] %v600
    %617 = vst [vmem:[#allocation8 + $0x30] sm:$0xff] %v601
    %618 = vst [vmem:[#allocation8 + $0x38] sm:$0xff] %v602
    %619 = vst [vmem:[#allocation8 + $0x40] sm:$0xff] %v603
    %620 = vst [vmem:[#allocation8 + $0x48] sm:$0xff] %v604
    %621 = vst [vmem:[#allocation8 + $0x50] sm:$0xff] %v605
    %622 = vst [vmem:[#allocation8 + $0x58] sm:$0xff] %v606
    %623 = vst [vmem:[#allocation8 + $0x60] sm:$0xff] %v607
    %624 = vst [vmem:[#allocation8 + $0x68] sm:$0xff] %v608
    %625 = vst [vmem:[#allocation8 + $0x70] sm:$0xff] %v609
    %626 = vst [vmem:[#allocation8 + $0x78] sm:$0xff] %v610
    // Predicated region
    $region26: #{tpu_custom_call.1} parent=1 // pred_check
      _
    $region27: #{tpu_custom_call.1} parent=1 // pred_check_branch
      %628 = sbr.rel (0) target = $region29
    $region28: #{tpu_custom_call.1} parent=1 // pred_region
      %630 = vsyncadd [#allocation4], 0
      %s631 = sshll.u32 [#allocation8], 4
      %s632 = int_to_ptr.vmem [resolvable:$true] %s631
      %s633 = sshll.u32 %s3, 4
      %s634 = int_to_ptr.hbm [resolvable:$true] %s633
      %639 = dma.vmem_to_hbm [thread:$0]  %s632, 2048, %s634, [#allocation4], 128, 128, 8
    $region29: #{tpu_custom_call.1} parent=1 // pred_fallthru
      _
    // Predicated region
    $region30: #{tpu_custom_call.1} parent=1 // pred_check
      _
    $region31: #{tpu_custom_call.1} parent=1 // pred_check_branch
      %641 = sbr.rel (0) target = $region33
    $region32: #{tpu_custom_call.1} parent=1 // pred_region
      %643 = dma.done [#allocation4], 2048
    $region33: #{tpu_custom_call.1} parent=1 // pred_fallthru
      _
    %644 = vsyncpa [#allocation3], 1
    %645 = vsyncpa [#allocation6], 1
    %646 = vsyncpa [#allocation4], 1

</llo_original>
